<compile_context>
chip_gen: v5e
topology: v5e:2x2
jax: 0.10.0
libtpu: 0.0.40
codegen_flags: <defaults>
</compile_context>

<pallas_src>
import functools

import jax
import jax.numpy as jnp
from jax.experimental import pallas as pl
from jax.experimental.pallas import tpu as pltpu


# ---------------------------------------------------------------------------
# Padding-aware VMEM accounting & batch-tile selection.
# ---------------------------------------------------------------------------
def _round_up(x, m):
    return ((x + m - 1) // m) * m


def _sublane_mult(dtype):
    # Sub-32-bit dtypes pack along sublanes: 8 rows (f32/i32), 16 (bf16), 32 (i8).
    return 32 // jnp.dtype(dtype).itemsize


def _row3(sub, lane, dtype):
    """Per-batch-row VMEM bytes of a (bt, sub, lane) block incl. tile padding."""
    return (_round_up(max(sub, 1), _sublane_mult(dtype)) *
            _round_up(max(lane, 1), 128) * jnp.dtype(dtype).itemsize)


def _row2(lane, dtype):
    """Per-batch-row VMEM bytes of a (bt, lane) block (bt kept a multiple of 8)."""
    return _round_up(max(lane, 1), 128) * jnp.dtype(dtype).itemsize


def _vmem_budget():
    """(per-step working-set budget, vmem_limit_bytes), generation aware."""
    cap = 64 * 1024 * 1024
    try:
        cap = pltpu.get_tpu_info().vmem_capacity_bytes
    except Exception:
        pass
    if cap <= 64 * 1024 * 1024:
        # v7x class: 64 MiB physical per TensorCore -> stay conservative.
        return 20 * 1024 * 1024, 44 * 1024 * 1024
    # v5e / v6e class: 128 MiB VMEM -> big blocks keep the DMA stream saturated.
    return 48 * 1024 * 1024, 100 * 1024 * 1024


def _pick_bt(B, per_row_bytes, budget_bytes, max_bt=None, min_steps=4):
    """Batch tile: multiple of 8, fits the VMEM budget, and leaves >= min_steps
    grid steps so the pipeline has work to overlap (and v7x's 2 TCs both run)."""
    align = 8
    bt_cap = max(align, (budget_bytes // max(per_row_bytes, 1)) // align * align)
    b_pad8 = _round_up(max(B, 1), align)
    bt_target = max(align, (b_pad8 // min_steps) // align * align)
    bt = min(bt_cap, bt_target, b_pad8)
    if max_bt is not None:
        bt = min(bt, max(align, _round_up(max_bt, align)))
    return max(bt, align)


# ---------------------------------------------------------------------------
# Kernel 1: pre-gathered big operand, layout [B, N, D] (D on the lane axis).
# Pure VPU multiply + reduce; no MXU (a batched matvec would be <=1/256 MXU
# utilization and the kernel is HBM-bound anyway).
# ---------------------------------------------------------------------------
def _score_kernel_bnd(big_ref, small_ref, o_ref):
    big = big_ref[...]                                    # (bt, N, D) storage dtype
    small = small_ref[...].astype(jnp.float32)            # (bt, D) f32
    o_ref[...] = jnp.sum(big.astype(jnp.float32) * small[:, None, :], axis=-1)


# Kernel 2: transposed layout [B, D, N], used when D < 128 <= N so the minor
# (lane) dim stays >=128-dense; the reduction runs over the sublane (D) axis.
def _score_kernel_bdn(big_ref, small_ref, o_ref):
    big = big_ref[...]                                    # (bt, D, N)
    small = small_ref[...].astype(jnp.float32)            # (bt, D)
    o_ref[...] = jnp.sum(big.astype(jnp.float32) * small[:, :, None], axis=1)


def _pallas_score_gathered(big, small, *, max_bt=None):
    """big: [B, N, D] (pre-gathered by XLA), small: [B, D] -> scores [B, N] f32."""
    B, N, D = big.shape
    small = small.astype(jnp.float32)
    transposed = (D < 128) and (N >= 128)
    if transposed:
        # Lane-dense layout; the swap fuses into the producing XLA gather.
        big = jnp.swapaxes(big, 1, 2)                     # [B, D, N]
    budget, vmem_limit = _vmem_budget()
    if transposed:
        per_row = (2 * _row3(D, N, big.dtype)             # big block (double-buffered)
                   + _row3(D, N, jnp.float32)             # f32 upcast / product temp
                   + 2 * _row2(D, jnp.float32)            # small
                   + 2 * _row2(N, jnp.float32))           # out
    else:
        per_row = (2 * _row3(N, D, big.dtype)
                   + _row3(N, D, jnp.float32)
                   + 2 * _row2(D, jnp.float32)
                   + 2 * _row2(N, jnp.float32))
    bt = _pick_bt(B, per_row, budget, max_bt)
    b_pad = _round_up(B, bt)
    if b_pad != B:
        big = jnp.pad(big, ((0, b_pad - B), (0, 0), (0, 0)))
        small = jnp.pad(small, ((0, b_pad - B), (0, 0)))
    grid = (b_pad // bt,)
    if transposed:
        kernel = _score_kernel_bdn
        big_spec = pl.BlockSpec((bt, D, N), lambda i: (i, 0, 0))
    else:
        kernel = _score_kernel_bnd
        big_spec = pl.BlockSpec((bt, N, D), lambda i: (i, 0, 0))
    out = pl.pallas_call(
        kernel,
        out_shape=jax.ShapeDtypeStruct((b_pad, N), jnp.float32),
        grid_spec=pltpu.PrefetchScalarGridSpec(
            num_scalar_prefetch=0,
            grid=grid,
            in_specs=[big_spec, pl.BlockSpec((bt, D), lambda i: (i, 0))],
            out_specs=pl.BlockSpec((bt, N), lambda i: (i, 0)),
        ),
        compiler_params=pltpu.CompilerParams(
            dimension_semantics=("parallel",),            # shards over v7x's 2 TCs
            vmem_limit_bytes=vmem_limit,
        ),
    )(big, small)
    return out[:B]


# ---------------------------------------------------------------------------
# Kernel 3: gather-fused scoring.  Negative-entity indices are scalar-prefetched
# into SMEM; `embs` stays in HBM (memory_space=pl.ANY) and the needed rows are
# DMA'd into VMEM scratch in double-buffered chunks of `chunk` rows, so the
# gathered [B, N, D] tensor is never written to / re-read from HBM.
# ---------------------------------------------------------------------------
def _fused_score_kernel(idx_ref, small_ref, embs_hbm, o_ref, rows_buf, sems,
                        *, bt, n_neg, chunk):
    ncr = n_neg // chunk              # chunks per batch element (static)
    n_t = bt * ncr                    # chunks handled in this grid step (static)
    b0 = pl.program_id(0) * bt        # global batch offset of this tile

    def issue(t, slot):
        lb = t // ncr
        c = t % ncr

        @pl.loop(0, chunk)
        def _(j):
            row = idx_ref[b0 + lb, c * chunk + j]
            pltpu.make_async_copy(
                embs_hbm.at[pl.ds(row, 1), :],
                rows_buf.at[lb, pl.ds(c * chunk + j, 1), :],
                sems.at[slot, j]).start()

    issue(0, 0)                       # prime chunk 0 into slot 0

    @pl.loop(0, n_t)
    def _(t):
        slot = t % 2

        @pl.when(t + 1 < n_t)
        def _():
            issue(t + 1, 1 - slot)    # keep DMA issue ahead of the waits

        lb = t // ncr
        c = t % ncr

        @pl.loop(0, chunk)
        def _(j):
            pltpu.make_async_copy(
                embs_hbm.at[pl.ds(0, 1), :],      # only dst shape/sem matter for wait
                rows_buf.at[lb, pl.ds(c * chunk + j, 1), :],
                sems.at[slot, j]).wait()

    big = rows_buf[...].astype(jnp.float32)               # (bt, N, D)
    small = small_ref[...].astype(jnp.float32)             # (bt, D)
    o_ref[...] = jnp.sum(big * small[:, None, :], axis=-1)


def _pallas_score_fused(embs, neg_idx, small, *, max_bt=None):
    """embs: [E, D] (stays in HBM), neg_idx: [B, N] int32, small: [B, D] f32."""
    E, D = embs.shape
    B, N = neg_idx.shape
    small = small.astype(jnp.float32)
    neg_idx = neg_idx.astype(jnp.int32)
    chunk = N if N <= 128 else 128        # caller guarantees N % 128 == 0 when N > 128
    budget, vmem_limit = _vmem_budget()
    per_row = (_row3(N, D, embs.dtype)            # rows_buf scratch (single buffer)
               + _row3(N, D, jnp.float32)         # f32 upcast / product temp
               + 2 * _row2(D, jnp.float32)        # small block (double-buffered)
               + 2 * _row2(N, jnp.float32))       # out block (double-buffered)
    bt = _pick_bt(B, per_row, budget, max_bt)
    b_pad = _round_up(B, bt)
    if b_pad != B:
        neg_idx = jnp.pad(neg_idx, ((0, b_pad - B), (0, 0)))   # padded rows fetch embs[0]
        small = jnp.pad(small, ((0, b_pad - B), (0, 0)))       # ... and score to 0
    grid = (b_pad // bt,)
    kernel = functools.partial(_fused_score_kernel, bt=bt, n_neg=N, chunk=chunk)
    out = pl.pallas_call(
        kernel,
        out_shape=jax.ShapeDtypeStruct((b_pad, N), jnp.float32),
        grid_spec=pltpu.PrefetchScalarGridSpec(
            num_scalar_prefetch=1,                # neg_idx -> SMEM
            grid=grid,
            in_specs=[pl.BlockSpec((bt, D), lambda i, idx: (i, 0)),
                      pl.BlockSpec(memory_space=pl.ANY)],      # embs stays in HBM
            out_specs=pl.BlockSpec((bt, N), lambda i, idx: (i, 0)),
            scratch_shapes=[pltpu.VMEM((bt, N, D), embs.dtype),
                            pltpu.SemaphoreType.DMA((2, chunk))],
        ),
        compiler_params=pltpu.CompilerParams(
            dimension_semantics=("parallel",),
            vmem_limit_bytes=vmem_limit,
        ),
    )(neg_idx, small, embs)
    return out[:B]


# ---------------------------------------------------------------------------
# Decoder (gathers / operand folding are glue; scoring runs in Pallas).
# ---------------------------------------------------------------------------
class DecoderConfig:
    def __init__(self, num_relations, gnn_dim, context_node=True,
                 link_negative_adversarial_sampling=True,
                 link_negative_adversarial_sampling_temperature=1.0,
                 link_regularizer_weight=0.01):
        self.num_relations = num_relations
        self.gnn_dim = gnn_dim
        self.context_node = context_node
        self.link_negative_adversarial_sampling = link_negative_adversarial_sampling
        self.link_negative_adversarial_sampling_temperature = (
            link_negative_adversarial_sampling_temperature)
        self.link_regularizer_weight = link_regularizer_weight


class Decoder:
    def __init__(self, config, key):
        self.config = config
        if config.context_node:
            self.num_relations = config.num_relations + 1
        else:
            self.num_relations = config.num_relations
        self.embedding_dim = config.gnn_dim
        self.negative_adversarial_sampling = config.link_negative_adversarial_sampling
        self.adversarial_temperature = (
            config.link_negative_adversarial_sampling_temperature)
        self.reg_param = config.link_regularizer_weight
        self.w_relation = jax.random.normal(
            key, (self.num_relations, self.embedding_dim), dtype=jnp.float32)

    # -- forward -----------------------------------------------------------
    def forward(self, embs, sample, mode='single'):
        if mode == 'single':
            # N == 1: the (bt, 1, D) tile would pad sublanes 1->8 and the output
            # is a single masked lane -> stay in plain JAX (kernel cost > work).
            head = embs[sample[0]].astype(jnp.float32)                  # [B, D]
            relation = self.w_relation[sample[1]].astype(jnp.float32)   # [B, D]
            tail = embs[sample[2]].astype(jnp.float32)                  # [B, D]
            return jnp.sum(head * relation * tail, axis=-1, keepdims=True)  # [B, 1]
        if mode == 'head-batch':
            tail_part, head_part = sample                   # [3, B], [B, Nneg]
            neg_idx = head_part
            small = (self.w_relation[tail_part[1]].astype(jnp.float32) *
                     embs[tail_part[2]].astype(jnp.float32))             # [B, D]
        elif mode == 'tail-batch':
            head_part, tail_part = sample                   # [3, B], [B, Nneg]
            neg_idx = tail_part
            small = (embs[head_part[0]].astype(jnp.float32) *
                     self.w_relation[head_part[1]].astype(jnp.float32))  # [B, D]
        else:
            raise ValueError('mode %s not supported' % mode)
        return self._score_negatives(embs, neg_idx, small)

    def _score_negatives(self, embs, neg_idx, small):
        B, N = neg_idx.shape
        D = embs.shape[1]
        itemsize = jnp.dtype(embs.dtype).itemsize
        fused_ok = (
            D * itemsize >= 512                      # per-row DMA big enough to amortize
            and N >= 8
            and (N <= 128 or N % 128 == 0)           # clean row-chunking
            and B * N * 4 <= 512 * 1024              # index table must fit in SMEM
        )
        if fused_ok:
            return _pallas_score_fused(embs, neg_idx, small)
        # TODO(synk): for larger index tables, DMA per-tile index blocks into SMEM
        # scratch instead of scalar-prefetching the whole table.
        big = embs[neg_idx]                          # XLA gather fallback (small rows)
        return _pallas_score_gathered(big, small)

    # -- API parity with the abstract score(h, r, t, mode) ------------------
    def score(self, h, r, t, mode):
        # DistMult: sum_d h*r*t.  TODO(synk): replace if the subclass differs.
        del mode
        if h.shape[1] == 1 and t.shape[1] == 1:
            return jnp.sum(h.astype(jnp.float32) * r.astype(jnp.float32) *
                           t.astype(jnp.float32), axis=-1)
        if h.shape[1] >= t.shape[1]:
            big, s1, s2 = h, r, t
        else:
            big, s1, s2 = t, h, r
        small = s1[:, 0, :].astype(jnp.float32) * s2[:, 0, :].astype(jnp.float32)
        return _pallas_score_gathered(big, small)

    def reg_loss(self):
        return jnp.mean(self.w_relation ** 2)


# ---------------------------------------------------------------------------
# Pure-JAX reference for correctness checking.
# ---------------------------------------------------------------------------
def _ref_score(h, r, t):
    return jnp.sum(h.astype(jnp.float32) * r.astype(jnp.float32) *
                   t.astype(jnp.float32), axis=-1)


if __name__ == "__main__":
    key = jax.random.PRNGKey(0)
    ks = jax.random.split(key, 12)

    ok = True

    # ----- small config: D=32, B=2, Nneg=8 (gathered [B,N,D] kernel) -------
    num_entities, D, B, Nneg = 64, 32, 2, 8
    config = DecoderConfig(num_relations=5, gnn_dim=D, context_node=True)
    decoder = Decoder(config, ks[0])
    embs = jax.random.normal(ks[1], (num_entities, D), dtype=jnp.float32)
    heads = jax.random.randint(ks[2], (B,), 0, num_entities)
    rels = jax.random.randint(ks[3], (B,), 0, decoder.num_relations)
    tails = jax.random.randint(ks[4], (B,), 0, num_entities)
    pos = jnp.stack([heads, rels, tails], axis=0)                    # [3, B]
    neg = jax.random.randint(ks[5], (B, Nneg), 0, num_entities)      # [B, Nneg]

    # single mode (pure JAX path)
    s = decoder.forward(embs, pos, mode='single')
    jax.block_until_ready(s)
    ref = _ref_score(embs[pos[0]][:, None], decoder.w_relation[pos[1]][:, None],
                     embs[pos[2]][:, None])
    ok &= (s.shape == (B, 1)) and bool(jnp.allclose(s, ref, atol=1e-3, rtol=1e-4))

    # head-batch mode
    s = decoder.forward(embs, (pos, neg), mode='head-batch')
    jax.block_until_ready(s)
    ref = _ref_score(embs[neg], decoder.w_relation[pos[1]][:, None],
                     embs[pos[2]][:, None])
    ok &= (s.shape == (B, Nneg)) and bool(jnp.allclose(s, ref, atol=1e-3, rtol=1e-4))

    # tail-batch mode
    s = decoder.forward(embs, (pos, neg), mode='tail-batch')
    jax.block_until_ready(s)
    ref = _ref_score(embs[pos[0]][:, None], decoder.w_relation[pos[1]][:, None],
                     embs[neg])
    ok &= (s.shape == (B, Nneg)) and bool(jnp.allclose(s, ref, atol=1e-3, rtol=1e-4))

    # bf16 storage / f32 compute
    embs_bf16 = embs.astype(jnp.bfloat16)
    s = decoder.forward(embs_bf16, (pos, neg), mode='head-batch')
    jax.block_until_ready(s)
    ref = _ref_score(embs_bf16[neg], decoder.w_relation[pos[1]][:, None],
                     embs_bf16[pos[2]][:, None])
    ok &= (s.shape == (B, Nneg)) and bool(jnp.allclose(s, ref, atol=1e-2, rtol=1e-3))

    # multi-step grid path (B=40, forced bt<=16 -> several grid steps + padding)
    big2 = jax.random.normal(ks[6], (40, 8, D), dtype=jnp.float32)
    small2 = jax.random.normal(ks[7], (40, D), dtype=jnp.float32)
    s = _pallas_score_gathered(big2, small2, max_bt=16)
    jax.block_until_ready(s)
    ref = jnp.sum(big2 * small2[:, None, :], axis=-1)
    ok &= (s.shape == (40, 8)) and bool(jnp.allclose(s, ref, atol=1e-3, rtol=1e-4))

    # lane-dense transposed path (D=32 < 128 <= Nneg=128)
    neg_wide = jax.random.randint(ks[8], (B, 128), 0, num_entities)
    s = decoder.forward(embs, (pos, neg_wide), mode='head-batch')
    jax.block_until_ready(s)
    ref = _ref_score(embs[neg_wide], decoder.w_relation[pos[1]][:, None],
                     embs[pos[2]][:, None])
    ok &= (s.shape == (B, 128)) and bool(jnp.allclose(s, ref, atol=1e-3, rtol=1e-4))

    # ----- fused-gather path: D=128 (row = 512 B), B=10, Nneg=128 ----------
    E2, D2, B2, N2 = 256, 128, 10, 128
    config2 = DecoderConfig(num_relations=5, gnn_dim=D2, context_node=True)
    decoder2 = Decoder(config2, ks[9])
    embs2 = jax.random.normal(ks[10], (E2, D2), dtype=jnp.float32)
    k_a, k_b, k_c, k_d = jax.random.split(ks[11], 4)
    heads2 = jax.random.randint(k_a, (B2,), 0, E2)
    rels2 = jax.random.randint(k_b, (B2,), 0, decoder2.num_relations)
    tails2 = jax.random.randint(k_c, (B2,), 0, E2)
    pos2 = jnp.stack([heads2, rels2, tails2], axis=0)
    neg2 = jax.random.randint(k_d, (B2, N2), 0, E2)
    s = decoder2.forward(embs2, (pos2, neg2), mode='tail-batch')
    jax.block_until_ready(s)
    ref = _ref_score(embs2[pos2[0]][:, None], decoder2.w_relation[pos2[1]][:, None],
                     embs2[neg2])
    ok &= (s.shape == (B2, N2)) and bool(jnp.allclose(s, ref, atol=1e-3, rtol=1e-4))

    if ok:
        print("KERNEL_OK")
    else:
        print("KERNEL_MISMATCH")
</pallas_src>

<mosaic_0001>
module attributes {stable_mosaic.version = 11 : i64} {
  func.func @_score_kernel_bnd(%arg0: i32, %arg1: memref<8x8x32xf32, #tpu.memory_space<vmem>>, %arg2: memref<8x32xf32, #tpu.memory_space<vmem>>, %arg3: memref<8x8xf32, #tpu.memory_space<vmem>>) attributes {dimension_semantics = [#tpu.dimension_semantics<parallel>], iteration_bounds = array<i64: 1>, scalar_prefetch = 0 : i64, scratch_operands = 0 : i64, tpu.core_type = #tpu.core_type<tc>, window_params = [{transform_indices = @transform_0, window_bounds = array<i64: 8, 8, 32>}, {transform_indices = @transform_1, window_bounds = array<i64: 8, 32>}, {transform_indices = @transform_2, window_bounds = array<i64: 8, 8>}]} {
    %c0 = arith.constant 0 : index
    %c0_0 = arith.constant 0 : index
    %c0_1 = arith.constant 0 : index
    %0 = vector.load %arg1[%c0, %c0_0, %c0_1] : memref<8x8x32xf32, #tpu.memory_space<vmem>>, vector<8x8x32xf32>
    %c0_2 = arith.constant 0 : index
    %c0_3 = arith.constant 0 : index
    %1 = vector.load %arg2[%c0_2, %c0_3] : memref<8x32xf32, #tpu.memory_space<vmem>>, vector<8x32xf32>
    %2 = vector.shape_cast %1 : vector<8x32xf32> to vector<8x1x32xf32>
    %3 = vector.broadcast %2 : vector<8x1x32xf32> to vector<8x8x32xf32>
    %4 = arith.mulf %0, %3 : vector<8x8x32xf32>
    %cst = arith.constant dense<0.000000e+00> : vector<8x8xf32>
    %5 = vector.multi_reduction <add>, %4, %cst [2] : vector<8x8x32xf32> to vector<8x8xf32>
    %c0_4 = arith.constant 0 : index
    %c0_5 = arith.constant 0 : index
    %6 = vector.load %arg3[%c0_4, %c0_5] : memref<8x8xf32, #tpu.memory_space<vmem>>, vector<8x8xf32>
    tpu.vector_store %arg3[%c0_4, %c0_5], %5 {strides = array<i32>} : memref<8x8xf32, #tpu.memory_space<vmem>>, vector<8x8xf32>,
    return
  }
  func.func @transform_0(%arg0: i32) -> (i32, i32, i32) {
    %c0_i32 = arith.constant 0 : i32
    %c0_i32_0 = arith.constant 0 : i32
    %c0_i32_1 = arith.constant 0 : i32
    return %arg0, %c0_i32, %c0_i32_0 : i32, i32, i32
  }
  func.func @transform_1(%arg0: i32) -> (i32, i32) {
    %c0_i32 = arith.constant 0 : i32
    %c0_i32_0 = arith.constant 0 : i32
    return %arg0, %c0_i32 : i32, i32
  }
  func.func @transform_2(%arg0: i32) -> (i32, i32) {
    %c0_i32 = arith.constant 0 : i32
    %c0_i32_0 = arith.constant 0 : i32
    return %arg0, %c0_i32 : i32, i32
  }
}

</mosaic_0001>

<llo_original>
// kernel: tpu_custom_call.1
$region0: #{tpu_custom_call.1}
  #allocation0 [shape = 'u32[]', space=smem, size = 0x4, offset = 0x4, fixed_abs, tag = 'smem constant byte address 0x4 - core index']
  #allocation1 [shape = 'u32[72,128]{1,0:T(1,128)}', space=vmem, size = 0x9000, scoped, tag = 'internal scratch']
  %s0 = inlined_call_operand.hbm [shape: f32[8,8,32], index: 0, kind: input, shape index: {}]
  %s1 = inlined_call_operand.hbm [shape: f32[8,32], index: 1, kind: input, shape index: {}]
  %s2 = inlined_call_operand.hbm [shape: f32[8,8], index: 2, kind: output, shape index: {}]
  %s3 = sld [smem:[#allocation0]]
  $region26: #{tpu_custom_call.1} parent=0
    _
  %s5 = ssub.s32 1, %s3
  %s6 = scalar_select 0, %s5, %s3
  $region1: #{tpu_custom_call.1} parent=0
    #allocation2 [shape = 'u8[32768]{0}', space=vmem, size = 0x8000, scoped, tag = 'input window, operand 0, single buffered']
    #allocation3 [shape = 's32[1]{0}', space=sflag, size = 0x4, scoped, tag = 'scoped memory for tpu_custom_call.1']
    #allocation4 [shape = 's32[1]{0}', space=sflag, size = 0x4, scoped, tag = 'scoped memory for tpu_custom_call.1']
    #allocation5 [shape = 'u8[4096]{0}', space=vmem, size = 0x1000, scoped, tag = 'input window, operand 1, single buffered']
    #allocation6 [shape = 's32[1]{0}', space=sflag, size = 0x4, scoped, tag = 'scoped memory for tpu_custom_call.1']
    #allocation7 [shape = 'u8[4096]{0}', space=vmem, size = 0x1000, scoped, tag = 'output window, operand 0, single buffered']
    %7 = vsyncpa [#allocation3], 0
    %8 = vsyncpa [#allocation6], 0
    %9 = vsyncpa [#allocation4], 0
    // Predicated region
    $region2: #{tpu_custom_call.1} parent=1 // pred_check
      _
    $region3: #{tpu_custom_call.1} parent=1 // pred_check_branch
      %11 = sbr.rel (0) target = $region5
    $region4: #{tpu_custom_call.1} parent=1 // pred_region
      %13 = vsyncadd [#allocation3], 0
      %s14 = sshll.u32 %s0, 4
      %s15 = int_to_ptr.hbm [resolvable:$true] %s14
      %s16 = sshll.u32 [#allocation2], 4
      %s17 = int_to_ptr.vmem [resolvable:$true] %s16
      %22 = dma.hbm_to_vmem [thread:$0]  %s15, 1024, %s17, [#allocation3], 128, 128, 8
    $region5: #{tpu_custom_call.1} parent=1 // pred_fallthru
      _
    // Predicated region
    $region6: #{tpu_custom_call.1} parent=1 // pred_check
      _
    $region7: #{tpu_custom_call.1} parent=1 // pred_check_branch
      %24 = sbr.rel (0) target = $region9
    $region8: #{tpu_custom_call.1} parent=1 // pred_region
      %26 = vsyncadd [#allocation6], 0
      %s28 = sshll.u32 %s1, 4
      %s29 = int_to_ptr.hbm [resolvable:$true] %s28
      %s30 = sshll.u32 [#allocation5], 4
      %s31 = int_to_ptr.vmem [resolvable:$true] %s30
      %33 = dma.hbm_to_vmem [thread:$0]  %s29, 128, %s31, [#allocation6]
    $region9: #{tpu_custom_call.1} parent=1 // pred_fallthru
      _
    // Predicated region
    $region10: #{tpu_custom_call.1} parent=1 // pred_check
      _
    $region11: #{tpu_custom_call.1} parent=1 // pred_check_branch
      %35 = sbr.rel (0) target = $region13
    $region12: #{tpu_custom_call.1} parent=1 // pred_region
      %37 = dma.done [#allocation3], 1024
    $region13: #{tpu_custom_call.1} parent=1 // pred_fallthru
      _
    // Predicated region
    $region14: #{tpu_custom_call.1} parent=1 // pred_check
      _
    $region15: #{tpu_custom_call.1} parent=1 // pred_check_branch
      %39 = sbr.rel (0) target = $region17
    $region16: #{tpu_custom_call.1} parent=1 // pred_region
      %41 = dma.done [#allocation6], 128
    $region17: #{tpu_custom_call.1} parent=1 // pred_fallthru
      _
    %v42 = vld [vmem:[#allocation2] sm:$0xff]
    %v43 = vld [vmem:[#allocation2 + $0x8] sm:$0xff]
    %v44 = vld [vmem:[#allocation2 + $0x10] sm:$0xff]
    %v45 = vld [vmem:[#allocation2 + $0x18] sm:$0xff]
    %v46 = vld [vmem:[#allocation2 + $0x20] sm:$0xff]
    %v47 = vld [vmem:[#allocation2 + $0x28] sm:$0xff]
    %v48 = vld [vmem:[#allocation2 + $0x30] sm:$0xff]
    %v49 = vld [vmem:[#allocation2 + $0x38] sm:$0xff]
    %v50 = vld [vmem:[#allocation5] sm:$0xff]
    %v52 = vrot.slane %v50, 1
    %v53 = vrot.slane %v50, 2
    %v54 = vrot.slane %v50, 3
    %v55 = vrot.slane %v50, 4
    %v56 = vrot.slane %v50, 5
    %v57 = vrot.slane %v50, 6
    %v58 = vrot.slane %v50, 7
    %v59 = vperm.slane %v50, 0
    %v60 = vperm.slane %v52, 0
    %v61 = vperm.slane %v53, 0
    %v62 = vperm.slane %v54, 0
    %v63 = vperm.slane %v55, 0
    %v64 = vperm.slane %v56, 0
    %v65 = vperm.slane %v57, 0
    %v66 = vperm.slane %v58, 0
    %v75 = vmul.f32 %v42, %v59
    %v76 = vmul.f32 %v43, %v60
    %v77 = vmul.f32 %v44, %v61
    %v78 = vmul.f32 %v45, %v62
    %v79 = vmul.f32 %v46, %v63
    %v80 = vmul.f32 %v47, %v64
    %v81 = vmul.f32 %v48, %v65
    %v82 = vmul.f32 %v49, %v66
    %vm83 = vcmask 261120
    %v84 = vsel %vm83, %v75, 0.0
    %85 = vadd.xlane.f32.xlu0 %v84
    %v86 = vpop.xlane.xlu0 %85
    %v87 = vsel %vm83, %v76, 0.0
    %88 = vadd.xlane.f32.xlu0 %v87
    %v89 = vpop.xlane.xlu0 %88
    %v90 = vsel %vm83, %v77, 0.0
    %91 = vadd.xlane.f32.xlu0 %v90
    %v92 = vpop.xlane.xlu0 %91
    %v93 = vsel %vm83, %v78, 0.0
    %94 = vadd.xlane.f32.xlu0 %v93
    %v95 = vpop.xlane.xlu0 %94
    %v96 = vsel %vm83, %v79, 0.0
    %97 = vadd.xlane.f32.xlu0 %v96
    %v98 = vpop.xlane.xlu0 %97
    %v99 = vsel %vm83, %v80, 0.0
    %100 = vadd.xlane.f32.xlu0 %v99
    %v101 = vpop.xlane.xlu0 %100
    %v102 = vsel %vm83, %v81, 0.0
    %103 = vadd.xlane.f32.xlu0 %v102
    %v104 = vpop.xlane.xlu0 %103
    %v105 = vsel %vm83, %v82, 0.0
    %106 = vadd.xlane.f32.xlu0 %v105
    %v107 = vpop.xlane.xlu0 %106
    %v116 = vlaneseq
    %v117 = vand.u32 %v116, 127
    %v118 = vperm.slane %v86, %v117
    %v119 = vperm.slane %v89, %v117
    %v120 = vperm.slane %v92, %v117
    %v121 = vperm.slane %v95, %v117
    %v122 = vperm.slane %v98, %v117
    %v123 = vperm.slane %v101, %v117
    %v124 = vperm.slane %v104, %v117
    %v125 = vperm.slane %v107, %v117
    %vm126 = vcmask 1041409
    %v127 = vsel %vm126, %v119, %v118
    %vm128 = vcmask 1042434
    %v129 = vsel %vm128, %v120, %v127
    %vm130 = vcmask 1043459
    %v131 = vsel %vm130, %v121, %v129
    %vm132 = vcmask 1044484
    %v133 = vsel %vm132, %v122, %v131
    %vm134 = vcmask 1045509
    %v135 = vsel %vm134, %v123, %v133
    %vm136 = vcmask 1046534
    %v137 = vsel %vm136, %v124, %v135
    %vm138 = vcmask 1047559
    %v139 = vsel %vm138, %v125, %v137
    %vm141 = vcmask 64512
    %142 = vst.msk [vmem:[#allocation7] sm:$0xff] %vm141, %v139
    // Predicated region
    $region18: #{tpu_custom_call.1} parent=1 // pred_check
      _
    $region19: #{tpu_custom_call.1} parent=1 // pred_check_branch
      %144 = sbr.rel (0) target = $region21
    $region20: #{tpu_custom_call.1} parent=1 // pred_region
      %146 = vsyncadd [#allocation4], 0
      %s148 = sshll.u32 [#allocation7], 4
      %s149 = int_to_ptr.vmem [resolvable:$true] %s148
      %s150 = sshll.u32 %s2, 4
      %s151 = int_to_ptr.hbm [resolvable:$true] %s150
      %153 = dma.vmem_to_hbm [thread:$0]  %s149, 128, %s151, [#allocation4]
    $region21: #{tpu_custom_call.1} parent=1 // pred_fallthru
      _
    // Predicated region
    $region22: #{tpu_custom_call.1} parent=1 // pred_check
      _
    $region23: #{tpu_custom_call.1} parent=1 // pred_check_branch
      %155 = sbr.rel (0) target = $region25
    $region24: #{tpu_custom_call.1} parent=1 // pred_region
      %157 = dma.done [#allocation4], 128
    $region25: #{tpu_custom_call.1} parent=1 // pred_fallthru
      _
    %158 = vsyncpa [#allocation3], 1
    %159 = vsyncpa [#allocation6], 1
    %160 = vsyncpa [#allocation4], 1

</llo_original>
